<compile_context>
chip_gen: v7x
topology: tpu7x:2x2x1
jax: 0.10.0
libtpu: 0.0.40
codegen_flags: <defaults>
</compile_context>

<pallas_src>
import jax
import jax.numpy as jnp
from jax.experimental import pallas as pl
from jax.experimental.pallas import tpu as pltpu


# --------------------------------------------------------------------------
# Kernel
# --------------------------------------------------------------------------
def _make_scalar_mix_kernel(n_layers: int, compute_dtype):
    """out = sum_k w[k] * x_k, accumulated in `compute_dtype`.

    w_ref : SMEM (N,) f32   -- gamma * softmax(weights), precomputed scalars
    refs  : N input VMEM tiles (tile_rows, H) followed by 1 output tile
    """

    def kernel(w_ref, *refs):
        x_refs = refs[:n_layers]
        o_ref = refs[n_layers]
        acc = (w_ref[0].astype(compute_dtype)
               * x_refs[0][...].astype(compute_dtype))
        for k in range(1, n_layers):
            acc = acc + (w_ref[k].astype(compute_dtype)
                         * x_refs[k][...].astype(compute_dtype))
        o_ref[...] = acc.astype(o_ref.dtype)

    return kernel


# --------------------------------------------------------------------------
# Host-side helpers
# --------------------------------------------------------------------------
def _device_kind() -> str:
    try:
        return jax.devices()[0].device_kind.lower()
    except Exception:  # pragma: no cover - CPU/interpret fallback
        return ""


def _snap_tile_rows(rows: int, tile_rows: int) -> int:
    """Prefer a tile (multiple of 8) that divides `rows` -> no ragged block."""
    if rows % tile_rows == 0:
        return tile_rows
    t = (tile_rows // 8) * 8
    lo = max(8, tile_rows // 2)
    while t >= lo:
        if rows % t == 0:
            return t
        t -= 8
    return tile_rows


# --------------------------------------------------------------------------
# ScalarMix wrapper
# --------------------------------------------------------------------------
def scalar_mix(tensors, weights, gamma):
    """gamma * sum_k softmax(weights)_k * tensors[k]; tensors[k]: (B, S, H)."""
    n = len(tensors)
    B, S, H = tensors[0].shape
    assert gamma.shape == (1,), "allennlp ScalarMix gamma is a (1,) parameter"

    in_dtype = tensors[0].dtype
    out_dtype = in_dtype
    in_item = jnp.dtype(in_dtype).itemsize
    out_item = jnp.dtype(out_dtype).itemsize

    kind = _device_kind()
    is_v7 = "v7" in kind

    # Lane-preserving flatten: merging leading dims is layout-free (no HBM
    # relayout copies), regardless of whether H is a multiple of 128.
    # TODO(synk): when H % 128 != 0 the lanes are under-filled; padding H to
    # the next multiple of 128 could be considered for very large inputs.
    rows, lanes = B * S, H
    flat = [t.reshape(rows, lanes) for t in tensors]

    # Compute dtype: bf16 math only on v7x (native bf16 VALU, keeps the kernel
    # cleanly HBM-bound at 3.2 TB/s).  f32 accumulation on v5e/v6e, where the
    # kernel is comfortably HBM-bound already (and v5e has no bf16 VPU).
    compute_dtype = (in_dtype if (is_v7 and in_dtype == jnp.bfloat16)
                     else jnp.float32)

    # Pipeline depth and VMEM footprint budget per generation.
    in_bufs = 3 if is_v7 else 2          # 3-deep hides DMA jitter at 3.2 TB/s
    out_bufs = 2
    budget = (24 << 20) if is_v7 else (48 << 20)   # v7x: 64 MiB phys VMEM

    bytes_per_row = lanes * (in_bufs * n * in_item + out_bufs * out_item)
    tile_rows = max(8, (budget // bytes_per_row // 8) * 8)
    tile_rows = min(tile_rows, rows)

    rows_p = rows
    if rows % 8 != 0 and tile_rows < rows:
        # Ragged row count with multiple tiles: pad to a multiple of 8 so the
        # block shape stays (8,128)-tiled; padded rows are sliced off below.
        pad = (-rows) % 8
        flat = [jnp.pad(t, ((0, pad), (0, 0))) for t in flat]
        rows_p = rows + pad

    if tile_rows >= rows_p:
        tile_rows = rows_p                     # single full-extent block
    else:
        tile_rows = _snap_tile_rows(rows_p, tile_rows)

    buffered_bytes = tile_rows * bytes_per_row
    vmem_cap = (56 << 20) if is_v7 else (100 << 20)
    vmem_limit = int(min(max(buffered_bytes + (12 << 20), 16 << 20), vmem_cap))

    # Tiny glue (N scalars): softmax + gamma scaling in plain JAX -> SMEM via
    # scalar prefetch.
    scaled_w = gamma.astype(jnp.float32)[0] * jax.nn.softmax(
        weights.astype(jnp.float32), axis=-1)

    grid = (pl.cdiv(rows_p, tile_rows),)

    def _idx(i, w):
        return (i, 0)

    if in_bufs != 2:
        in_specs = [pl.BlockSpec((tile_rows, lanes), _idx,
                                 pipeline_mode=pl.Buffered(in_bufs))
                    for _ in range(n)]
    else:
        in_specs = [pl.BlockSpec((tile_rows, lanes), _idx) for _ in range(n)]

    # Only CORE_PARALLEL actually splits work across v7x's 2 TensorCores;
    # plain "parallel" barely changes codegen.
    dim_sem = (pltpu.CORE_PARALLEL,) if is_v7 else ("parallel",)

    out = pl.pallas_call(
        _make_scalar_mix_kernel(n, compute_dtype),
        out_shape=jax.ShapeDtypeStruct((rows_p, lanes), out_dtype),
        grid_spec=pltpu.PrefetchScalarGridSpec(
            num_scalar_prefetch=1,                       # scaled_w -> SMEM
            grid=grid,
            in_specs=in_specs,
            out_specs=pl.BlockSpec((tile_rows, lanes), _idx),
        ),
        compiler_params=pltpu.CompilerParams(
            dimension_semantics=dim_sem,
            vmem_limit_bytes=vmem_limit),
    )(scaled_w, *flat)

    if rows_p != rows:
        out = out[:rows]
    return out.reshape(B, S, H)


def elmo_embedding_forward(layer_activations, weights, gamma, *,
                           bos_eos=(True, True)):
    """ELMoEmbedding.forward given precomputed biLM layer activations."""
    # TODO(synk): the allennlp char-CNN + highway + biLSTM that map `chars`
    # to per-layer activations, training-time weight/layer dropout, and the
    # nn.Linear projection (Identity when n_out == hidden_size) are not
    # translated; only the inference-time ScalarMix is a Pallas kernel.
    x = scalar_mix(layer_activations, weights, gamma)
    if not bos_eos[0]:
        x = x[:, 1:]
    if not bos_eos[1]:
        x = x[:, :-1]
    return x


# --------------------------------------------------------------------------
# Pure-JAX reference
# --------------------------------------------------------------------------
def scalar_mix_ref(tensors, weights, gamma):
    s = jax.nn.softmax(weights.astype(jnp.float32), axis=-1)
    acc = s[0] * tensors[0].astype(jnp.float32)
    for k in range(1, len(tensors)):
        acc = acc + s[k] * tensors[k].astype(jnp.float32)
    return (gamma.astype(jnp.float32)[0] * acc).astype(tensors[0].dtype)


if __name__ == "__main__":
    key = jax.random.PRNGKey(0)
    n_layers = 3          # ELMo mixes 3 biLM layers

    # nn.Parameter init from allennlp ScalarMix: weights = zeros(N), gamma = [1.0]
    weights = jnp.zeros((n_layers,), dtype=jnp.float32)
    gamma = jnp.array([1.0], dtype=jnp.float32)

    ok = True
    for (B, S, H) in [(2, 8, 32),      # small demo shape (H not lane-aligned)
                      (2, 8, 256)]:    # lane-dense path (H % 128 == 0)
        keys = jax.random.split(jax.random.fold_in(key, H), n_layers)
        # bf16 HBM residency for the bandwidth-bound mix.
        tensors = [
            jax.random.normal(k, (B, S, H), dtype=jnp.float32).astype(jnp.bfloat16)
            for k in keys
        ]

        out = elmo_embedding_forward(tensors, weights, gamma,
                                     bos_eos=(True, True))
        out = jax.block_until_ready(out)

        ref = scalar_mix_ref(tensors, weights, gamma)
        ok &= out.shape == (B, S, H)
        ok &= out.dtype == tensors[0].dtype
        ok &= bool(jnp.allclose(out.astype(jnp.float32), ref.astype(jnp.float32),
                                atol=3e-2, rtol=3e-2))

    assert ok, "mismatch vs reference"
    print("KERNEL_OK")
</pallas_src>

<mosaic_0001>
module attributes {stable_mosaic.version = 11 : i64} {
  func.func @kernel(%arg0: i32, %arg1: memref<3xf32, #tpu.memory_space<smem>>, %arg2: memref<16x32xbf16, #tpu.memory_space<vmem>>, %arg3: memref<16x32xbf16, #tpu.memory_space<vmem>>, %arg4: memref<16x32xbf16, #tpu.memory_space<vmem>>, %arg5: memref<16x32xbf16, #tpu.memory_space<vmem>>) attributes {dimension_semantics = [#tpu.dimension_semantics<parallel>], iteration_bounds = array<i64: 1>, scalar_prefetch = 1 : i64, scratch_operands = 0 : i64, tpu.core_type = #tpu.core_type<tc>, window_params = [{transform_indices = @transform_0, window_bounds = array<i64: 16, 32>}, {transform_indices = @transform_1, window_bounds = array<i64: 16, 32>}, {transform_indices = @transform_2, window_bounds = array<i64: 16, 32>}, {transform_indices = @transform_3, window_bounds = array<i64: 16, 32>}]} {
    %c0 = arith.constant 0 : index
    %0 = memref.load %arg1[%c0] : memref<3xf32, #tpu.memory_space<smem>>
    %c0_0 = arith.constant 0 : index
    %c0_1 = arith.constant 0 : index
    %1 = vector.load %arg2[%c0_0, %c0_1] : memref<16x32xbf16, #tpu.memory_space<vmem>>, vector<16x32xbf16>
    %2 = arith.extf %1 : vector<16x32xbf16> to vector<16x32xf32>
    %3 = vector.broadcast %0 : f32 to vector<16x32xf32>
    %4 = arith.mulf %3, %2 : vector<16x32xf32>
    %c1 = arith.constant 1 : index
    %5 = memref.load %arg1[%c1] : memref<3xf32, #tpu.memory_space<smem>>
    %c0_2 = arith.constant 0 : index
    %c0_3 = arith.constant 0 : index
    %6 = vector.load %arg3[%c0_2, %c0_3] : memref<16x32xbf16, #tpu.memory_space<vmem>>, vector<16x32xbf16>
    %7 = arith.extf %6 : vector<16x32xbf16> to vector<16x32xf32>
    %8 = vector.broadcast %5 : f32 to vector<16x32xf32>
    %9 = arith.mulf %8, %7 : vector<16x32xf32>
    %10 = arith.addf %4, %9 : vector<16x32xf32>
    %c2 = arith.constant 2 : index
    %11 = memref.load %arg1[%c2] : memref<3xf32, #tpu.memory_space<smem>>
    %c0_4 = arith.constant 0 : index
    %c0_5 = arith.constant 0 : index
    %12 = vector.load %arg4[%c0_4, %c0_5] : memref<16x32xbf16, #tpu.memory_space<vmem>>, vector<16x32xbf16>
    %13 = arith.extf %12 : vector<16x32xbf16> to vector<16x32xf32>
    %14 = vector.broadcast %11 : f32 to vector<16x32xf32>
    %15 = arith.mulf %14, %13 : vector<16x32xf32>
    %16 = arith.addf %10, %15 : vector<16x32xf32>
    %17 = arith.truncf %16 : vector<16x32xf32> to vector<16x32xbf16>
    %c0_6 = arith.constant 0 : index
    %c0_7 = arith.constant 0 : index
    %18 = vector.load %arg5[%c0_6, %c0_7] : memref<16x32xbf16, #tpu.memory_space<vmem>>, vector<16x32xbf16>
    tpu.vector_store %arg5[%c0_6, %c0_7], %17 {strides = array<i32>} : memref<16x32xbf16, #tpu.memory_space<vmem>>, vector<16x32xbf16>,
    return
  }
  func.func @transform_0(%arg0: i32, %arg1: memref<3xf32, #tpu.memory_space<smem>>) -> (i32, i32) {
    %c0_i32 = arith.constant 0 : i32
    %c0_i32_0 = arith.constant 0 : i32
    return %arg0, %c0_i32 : i32, i32
  }
  func.func @transform_1(%arg0: i32, %arg1: memref<3xf32, #tpu.memory_space<smem>>) -> (i32, i32) {
    %c0_i32 = arith.constant 0 : i32
    %c0_i32_0 = arith.constant 0 : i32
    return %arg0, %c0_i32 : i32, i32
  }
  func.func @transform_2(%arg0: i32, %arg1: memref<3xf32, #tpu.memory_space<smem>>) -> (i32, i32) {
    %c0_i32 = arith.constant 0 : i32
    %c0_i32_0 = arith.constant 0 : i32
    return %arg0, %c0_i32 : i32, i32
  }
  func.func @transform_3(%arg0: i32, %arg1: memref<3xf32, #tpu.memory_space<smem>>) -> (i32, i32) {
    %c0_i32 = arith.constant 0 : i32
    %c0_i32_0 = arith.constant 0 : i32
    return %arg0, %c0_i32 : i32, i32
  }
}

</mosaic_0001>

<llo_original>
// kernel: tpu_custom_call.1
$region0: #{tpu_custom_call.1}
  #allocation0 [shape = 'u32[]', space=smem, size = 0x4, offset = 0x4, fixed_abs, tag = 'smem constant byte address 0x4 - core index']
  #allocation1 [shape = 'u32[144,128]{1,0:T(1,128)}', space=vmem, size = 0x12000, scoped, tag = 'internal scratch']
  #allocation2 [shape = 's32[1]{0}', space=sflag, size = 0x4, scoped, tag = 'scoped memory for tpu_custom_call.1']
  #allocation3 [shape = 'u8[512]{0}', space=smem, size = 0x200, scoped, tag = 'prefetched SMEM operand 0']
  %s0 = inlined_call_operand.hbm [shape: f32[3], index: 0, kind: input, shape index: {}]
  %s1 = inlined_call_operand.hbm [shape: bf16[16,32], index: 1, kind: input, shape index: {}]
  %s2 = inlined_call_operand.hbm [shape: bf16[16,32], index: 2, kind: input, shape index: {}]
  %s3 = inlined_call_operand.vmem [shape: bf16[16,32], index: 3, kind: input, shape index: {}]
  %s4 = inlined_call_operand.hbm [shape: bf16[16,32], index: 4, kind: output, shape index: {}]
  %s5 = sld [smem:[#allocation0]]
  $region30: #{tpu_custom_call.1} parent=0
    _
  %s7 = ssub.s32 1, %s5
  %s8 = scalar_select 0, %s7, %s5
  %10 = dma.hbm_to_smem %s0, 16, [#allocation3], [#allocation2]
  %11 = dma.done [#allocation2], 16
  %12 = sfence
  $region1: #{tpu_custom_call.1} parent=0
    #allocation4 [shape = 'u8[4096]{0}', space=vmem, size = 0x1000, scoped, tag = 'input window, operand 1, single buffered']
    #allocation5 [shape = 's32[1]{0}', space=sflag, size = 0x4, scoped, tag = 'scoped memory for tpu_custom_call.1']
    #allocation6 [shape = 's32[1]{0}', space=sflag, size = 0x4, scoped, tag = 'scoped memory for tpu_custom_call.1']
    #allocation7 [shape = 'u8[4096]{0}', space=vmem, size = 0x1000, scoped, tag = 'input window, operand 2, single buffered']
    #allocation8 [shape = 's32[1]{0}', space=sflag, size = 0x4, scoped, tag = 'scoped memory for tpu_custom_call.1']
    #allocation9 [shape = 'u8[4096]{0}', space=vmem, size = 0x1000, scoped, tag = 'output window, operand 0, single buffered']
    %13 = vsyncpa [#allocation5], 0
    %14 = vsyncpa [#allocation8], 0
    %15 = vsyncpa [#allocation6], 0
    // Predicated region
    $region2: #{tpu_custom_call.1} parent=1 // pred_check
      _
    $region3: #{tpu_custom_call.1} parent=1 // pred_check_branch
      %17 = sbr.rel (0) target = $region5
    $region4: #{tpu_custom_call.1} parent=1 // pred_region
      %s19 = ssub.s32 128, 128
      %20 = vsyncadd [#allocation5], %s19
      %s21 = sshll.u32 [#allocation4], 4
      %s22 = int_to_ptr.vmem [resolvable:$true] %s21
      %27 = dma.hbm_to_vmem [thread:$0]  %s1, 128, %s22, [#allocation5], 64, 64, 4
    $region5: #{tpu_custom_call.1} parent=1 // pred_fallthru
      _
    // Predicated region
    $region6: #{tpu_custom_call.1} parent=1 // pred_check
      _
    $region7: #{tpu_custom_call.1} parent=1 // pred_check_branch
      %29 = sbr.rel (0) target = $region9
    $region8: #{tpu_custom_call.1} parent=1 // pred_region
      %s31 = ssub.s32 128, 128
      %32 = vsyncadd [#allocation8], %s31
      %s33 = sshll.u32 [#allocation7], 4
      %s34 = int_to_ptr.vmem [resolvable:$true] %s33
      %39 = dma.hbm_to_vmem [thread:$0]  %s2, 128, %s34, [#allocation8], 64, 64, 4
    $region9: #{tpu_custom_call.1} parent=1 // pred_fallthru
      _
    // Predicated region
    $region10: #{tpu_custom_call.1} parent=1 // pred_check
      _
    $region11: #{tpu_custom_call.1} parent=1 // pred_check_branch
      %41 = sbr.rel (0) target = $region13
    $region12: #{tpu_custom_call.1} parent=1 // pred_region
      _
    $region13: #{tpu_custom_call.1} parent=1 // pred_fallthru
      _
    // Predicated region
    $region14: #{tpu_custom_call.1} parent=1 // pred_check
      _
    $region15: #{tpu_custom_call.1} parent=1 // pred_check_branch
      %43 = sbr.rel (0) target = $region17
    $region16: #{tpu_custom_call.1} parent=1 // pred_region
      %44 = dma.done [#allocation5], 128
    $region17: #{tpu_custom_call.1} parent=1 // pred_fallthru
      _
    // Predicated region
    $region18: #{tpu_custom_call.1} parent=1 // pred_check
      _
    $region19: #{tpu_custom_call.1} parent=1 // pred_check_branch
      %46 = sbr.rel (0) target = $region21
    $region20: #{tpu_custom_call.1} parent=1 // pred_region
      %47 = dma.done [#allocation8], 128
    $region21: #{tpu_custom_call.1} parent=1 // pred_fallthru
      _
    %s48 = sld [smem:[#allocation3]]
    %v49 = vld [vmem:[#allocation4] sm:$0xf]
    %v50 = vld [vmem:[#allocation4 + $0x4] sm:$0xf]
    %v51 = vunpack.c.l.bf16 %v49
    %v52 = vunpack.c.l.bf16 %v50
    %v53 = vstv %s48
    %v54 = vmul.f32 %v53, %v51
    %v55 = vmul.f32 %v53, %v52
    %s56 = sld [smem:[#allocation3 + $0x1]]
    %v57 = vld [vmem:[#allocation7] sm:$0xf]
    %v58 = vld [vmem:[#allocation7 + $0x4] sm:$0xf]
    %v59 = vunpack.c.l.bf16 %v57
    %v60 = vunpack.c.l.bf16 %v58
    %v61 = vstv %s56
    %v62 = vmul.f32 %v61, %v59
    %v63 = vmul.f32 %v61, %v60
    %v64 = vadd.f32 %v54, %v62
    %v65 = vadd.f32 %v55, %v63
    %s66 = sld [smem:[#allocation3 + $0x2]]
    %v67 = vld [vmem:[%s3] sm:$0xf]
    %v68 = vld [vmem:[%s3 + $0x4] sm:$0xf]
    %v69 = vunpack.c.l.bf16 %v67
    %v70 = vunpack.c.l.bf16 %v68
    %v71 = vstv %s66
    %v72 = vmul.f32 %v71, %v69
    %v73 = vmul.f32 %v71, %v70
    %v74 = vadd.f32 %v64, %v72
    %v75 = vadd.f32 %v65, %v73
    %v76 = vpack.c.bf16 %v75, %v74
    %v78 = vunpack.c.l.b16 %v76
    %v79 = vunpack.c.h.b16 %v76
    %v80 = vpack.c.b16 %v78, %v78
    %v81 = vpack.c.b16 %v79, %v79
    %vm84 = vcmask 257024
    %85 = vst.msk [vmem:[#allocation9] sm:$0xf] %vm84, %v80
    %86 = vst.msk [vmem:[#allocation9 + $0x4] sm:$0xf] %vm84, %v81
    // Predicated region
    $region22: #{tpu_custom_call.1} parent=1 // pred_check
      _
    $region23: #{tpu_custom_call.1} parent=1 // pred_check_branch
      %88 = sbr.rel (0) target = $region25
    $region24: #{tpu_custom_call.1} parent=1 // pred_region
      %s90 = ssub.s32 128, 128
      %91 = vsyncadd [#allocation6], %s90
      %s92 = sshll.u32 [#allocation9], 4
      %s93 = int_to_ptr.vmem [resolvable:$true] %s92
      %98 = dma.vmem_to_hbm [thread:$0]  %s93, 128, %s4, [#allocation6], 64, 64, 4
    $region25: #{tpu_custom_call.1} parent=1 // pred_fallthru
      _
    // Predicated region
    $region26: #{tpu_custom_call.1} parent=1 // pred_check
      _
    $region27: #{tpu_custom_call.1} parent=1 // pred_check_branch
      %100 = sbr.rel (0) target = $region29
    $region28: #{tpu_custom_call.1} parent=1 // pred_region
      %101 = dma.done [#allocation6], 128
    $region29: #{tpu_custom_call.1} parent=1 // pred_fallthru
      _
    %102 = vsyncpa [#allocation5], 1
    %103 = vsyncpa [#allocation8], 1
    %104 = vsyncpa [#allocation6], 1

</llo_original>
